<compile_context>
chip_gen: v7x
topology: tpu7x:2x2x1
jax: 0.10.0
libtpu: 0.0.40
codegen_flags: <defaults>
</compile_context>

<pallas_src>
import functools

import jax
import jax.numpy as jnp
from jax.experimental import pallas as pl
from jax.experimental.pallas import tpu as pltpu


_NEG_PAD = -1e30  # class-padding value for student logits (exp underflows to exactly 0)


def _soft_distill_kernel(temp_ref, nrows_ref, teacher_ref, student_ref, labels_ref,
                         ce_out_ref, kl_out_ref, *scratch, num_c_chunks):
    """Per-(batch-tile, class-chunk) partial sums for CE and KL.

    Per batch tile i (written as lane-dense (1, 8, 128) broadcast blocks):
      ce_out[i] = sum over valid rows of (logsumexp(student_row) - student_row[label])
      kl_out[i] = sum over rows/classes of teacher * (log(teacher) - log(T) - student/T)
    The outer 1/T factor and all the means / lambda mixing happen in the JAX wrapper.
    """
    b_idx = pl.program_id(0)
    t = temp_ref[0]                               # runtime temperature (SMEM scalar)
    n_valid = nrows_ref[0]                        # true (unpadded) batch size
    inv_t = 1.0 / t                               # scalar, hoisted out of the element loop
    log_t = jnp.log(t)

    student = student_ref[...].astype(jnp.float32)    # (tile_n, tile_c)
    teacher = teacher_ref[...].astype(jnp.float32)    # (tile_n, tile_c)
    labels = labels_ref[...]                           # (tile_n, 1) int32
    tn, tc = student.shape

    # KL pointwise term. Keep the `where` outermost: it masks the 0*log(0)=NaN lanes.
    kl_elem = jnp.where(teacher == 0.0, 0.0,
                        teacher * (jnp.log(teacher) - log_t - student * inv_t))
    kl_rows = jnp.sum(kl_elem, axis=-1, keepdims=True)              # (tile_n, 1)

    chunk_max = jnp.max(student, axis=-1, keepdims=True)            # (tile_n, 1)

    def write_partials(ce_rows, kl_rows_total):
        # Zero-padded teacher rows contribute exactly 0 to KL (relies on jnp.pad with
        # zeros), so only the CE rows of the *last* batch tile need masking.
        def emit(ce_r):
            ce_val = jnp.sum(ce_r)
            kl_val = jnp.sum(kl_rows_total)
            ce_out_ref[...] = jnp.full(ce_out_ref.shape, ce_val, dtype=jnp.float32)
            kl_out_ref[...] = jnp.full(kl_out_ref.shape, kl_val, dtype=jnp.float32)

        last_b = pl.num_programs(0) - 1

        @pl.when(b_idx < last_b)
        def _():
            emit(ce_rows)

        @pl.when(b_idx == last_b)
        def _():
            row_ids = b_idx * tn + jax.lax.broadcasted_iota(jnp.int32, (tn, 1), 0)
            emit(jnp.where(row_ids < n_valid, ce_rows, 0.0))

    if num_c_chunks == 1:
        # Whole class axis in one block: single-pass softmax statistics.
        sumexp = jnp.sum(jnp.exp(student - chunk_max), axis=-1, keepdims=True)
        lse = chunk_max + jnp.log(sumexp)                            # (tile_n, 1)
        class_ids = jax.lax.broadcasted_iota(jnp.int32, (tn, tc), 1)
        picked = jnp.sum(jnp.where(class_ids == labels, student, 0.0),
                         axis=-1, keepdims=True)
        write_partials(lse - picked, kl_rows)
    else:
        # Large-C fallback: online logsumexp across class chunks (grid axis 1).
        m_scr, l_scr, picked_scr, kl_scr = scratch
        c_idx = pl.program_id(1)

        @pl.when(c_idx == 0)
        def _():
            m_scr[...] = jnp.full(m_scr.shape, -jnp.inf, dtype=jnp.float32)
            l_scr[...] = jnp.zeros_like(l_scr)
            picked_scr[...] = jnp.zeros_like(picked_scr)
            kl_scr[...] = jnp.zeros_like(kl_scr)

        m_prev = m_scr[...]
        m_new = jnp.maximum(m_prev, chunk_max)
        l_scr[...] = (l_scr[...] * jnp.exp(m_prev - m_new)
                      + jnp.sum(jnp.exp(student - m_new), axis=-1, keepdims=True))
        m_scr[...] = m_new

        class_ids = c_idx * tc + jax.lax.broadcasted_iota(jnp.int32, (tn, tc), 1)
        picked_scr[...] += jnp.sum(jnp.where(class_ids == labels, student, 0.0),
                                   axis=-1, keepdims=True)
        kl_scr[...] += kl_rows

        @pl.when(c_idx == num_c_chunks - 1)
        def _():
            lse = m_scr[...] + jnp.log(l_scr[...])
            write_partials(lse - picked_scr[...], kl_scr[...])


def soft_distillation_loss(teacher_y, student_y, y, temperature, lambda_balancing,
                           tile_n=None, tile_c=None):
    n, c = student_y.shape
    assert teacher_y.shape == (n, c)
    itemsize = jnp.dtype(student_y.dtype).itemsize
    sub = max(8, 32 // itemsize)                 # sublane packing: f32 -> 8, bf16 -> 16

    # ---- Generation-aware VMEM budgets -------------------------------------------
    try:
        vmem_cap = int(pltpu.get_tpu_info().vmem_capacity_bytes)
    except Exception:
        vmem_cap = 64 << 20                      # conservative (v7x-sized) fallback
    if vmem_cap >= (100 << 20):                  # 128-MiB parts (v5e / v6e)
        block_target = 8 << 20                   # per-input streaming block
        vmem_cap_limit = 96 << 20
    else:                                        # 64-MiB parts (v7x): leave headroom
        block_target = 4 << 20
        vmem_cap_limit = 52 << 20

    row_bytes = c * itemsize

    # ---- Tile selection ------------------------------------------------------------
    if tile_c is None:
        if tile_n is not None or sub * row_bytes <= block_target:
            tile_c = c                           # whole class axis in one block
        else:                                    # huge C: chunk the class axis
            tile_c = (block_target // (sub * itemsize)) // 128 * 128
    if tile_c >= c:
        tile_c = c                               # full-dim block, no class padding
    else:
        tile_c = max(128, (int(tile_c) // 128) * 128)

    if tile_n is None:
        tile_n = max(sub, block_target // (tile_c * itemsize))
        tile_n = min(tile_n, 4096)
    tile_n = max(sub, (int(tile_n) // sub) * sub)
    if n <= tile_n:
        tile_n = max(sub, -(-n // sub) * sub)    # whole (padded) batch in one tile

    c_pad = -(-c // tile_c) * tile_c if tile_c < c else c
    n_pad = -(-n // tile_n) * tile_n

    # ---- Padding (teacher rows/cols padded with exact zeros -> contribute 0 KL) ----
    if c_pad != c:
        student_y = jnp.pad(student_y, ((0, 0), (0, c_pad - c)),
                            constant_values=jnp.array(_NEG_PAD, dtype=student_y.dtype))
        teacher_y = jnp.pad(teacher_y, ((0, 0), (0, c_pad - c)))
    if n_pad != n:
        student_y = jnp.pad(student_y, ((0, n_pad - n), (0, 0)))
        teacher_y = jnp.pad(teacher_y, ((0, n_pad - n), (0, 0)))
        y = jnp.pad(y, (0, n_pad - n))
    labels = y.astype(jnp.int32).reshape(n_pad, 1)

    temp = jnp.asarray(temperature, dtype=jnp.float32).reshape(1)
    nrows = jnp.asarray(n, dtype=jnp.int32).reshape(1)

    grid_n = n_pad // tile_n
    grid_c = c_pad // tile_c

    out_shape = (jax.ShapeDtypeStruct((grid_n, 8, 128), jnp.float32),
                 jax.ShapeDtypeStruct((grid_n, 8, 128), jnp.float32))

    if grid_c == 1:
        grid = (grid_n,)
        dim_sem = ("parallel",)                  # per-tile partials -> both TCs on v7x
        big_map = lambda i: (i, 0)
        lbl_map = lambda i: (i, 0)
        out_map = lambda i: (i, 0, 0)
        scratch_shapes = []
    else:
        grid = (grid_n, grid_c)
        dim_sem = ("parallel", "arbitrary")      # class axis is the (serial) reduction
        big_map = lambda i, k: (i, k)
        lbl_map = lambda i, k: (i, 0)
        out_map = lambda i, k: (i, 0, 0)
        scratch_shapes = [pltpu.VMEM((tile_n, 1), jnp.float32)] * 4  # m, l, picked, kl

    vmem_needed = (4 * tile_n * tile_c * itemsize          # 2 inputs x double buffer
                   + 2 * tile_n * 128 * 4                  # label tiles (lane-padded)
                   + 4 * 8 * 128 * 4 * 2                   # two small partial outputs
                   + (4 * tile_n * 512 if grid_c > 1 else 0)   # row scratch (lane-padded)
                   + (4 << 20))                            # headroom
    vmem_limit = int(min(max(vmem_needed, 32 << 20), vmem_cap_limit))

    kernel = functools.partial(_soft_distill_kernel, num_c_chunks=grid_c)
    ce_part, kl_part = pl.pallas_call(
        kernel,
        out_shape=out_shape,
        grid=grid,
        in_specs=[
            pl.BlockSpec(memory_space=pltpu.SMEM),              # temperature scalar
            pl.BlockSpec(memory_space=pltpu.SMEM),              # true batch size
            pl.BlockSpec((tile_n, tile_c), big_map),            # teacher tile
            pl.BlockSpec((tile_n, tile_c), big_map),            # student tile
            pl.BlockSpec((tile_n, 1), lbl_map),                 # labels tile
        ],
        out_specs=(pl.BlockSpec((1, 8, 128), out_map),          # CE partials
                   pl.BlockSpec((1, 8, 128), out_map)),         # KL partials
        scratch_shapes=scratch_shapes,
        compiler_params=pltpu.CompilerParams(
            dimension_semantics=dim_sem,
            vmem_limit_bytes=vmem_limit),
    )(temp, nrows, teacher_y, student_y, labels)

    # ---- Tiny final combine in plain JAX (lets the batch grid run fully parallel) ----
    t = jnp.asarray(temperature, dtype=jnp.float32)
    lam = float(lambda_balancing)
    ce_sum = jnp.sum(ce_part[:, 0, 0])
    kl_sum = jnp.sum(kl_part[:, 0, 0])
    ce = ce_sum / n                               # CrossEntropyLoss: mean over batch
    kld = kl_sum / (t * (n * c))                  # KLDivLoss 'mean' over N*C; 1/T folded here
    return (1.0 - lam) * ce + lam * (t * t) * kld


def _reference_loss(teacher_y, student_y, y, temperature, lam):
    # Pure-JAX reference of the PyTorch forward.
    log_probs = jax.nn.log_softmax(student_y.astype(jnp.float32), axis=-1)
    ce = -jnp.mean(jnp.take_along_axis(log_probs, y[:, None], axis=-1))
    target = teacher_y.astype(jnp.float32) / temperature
    inp = student_y.astype(jnp.float32) / temperature
    xlogy = jnp.where(target == 0.0, 0.0, target * jnp.log(target))
    kld = jnp.mean(xlogy - target * inp)
    return (1.0 - lam) * ce + lam * temperature ** 2 * kld


if __name__ == "__main__":
    temperature = 3.0
    lambda_balancing = 0.5       # module __init__ argument (deterministic in-script)

    def make_inputs(key, n, c, dtype=jnp.float32):
        k1, k2, k3 = jax.random.split(key, 3)
        student = jax.random.normal(k1, (n, c), dtype=jnp.float32)
        # Teacher chosen so teacher_y / T is a valid probability distribution
        # (otherwise the PyTorch module's KLDivLoss would produce NaN too).
        teacher = jax.nn.softmax(jax.random.normal(k2, (n, c), dtype=jnp.float32),
                                 axis=-1) * temperature
        y = jax.random.randint(k3, (n,), 0, c, dtype=jnp.int32)
        return teacher.astype(dtype), student.astype(dtype), y

    def check(name, teacher, student, y, tol=1e-5, **kw):
        loss = soft_distillation_loss(teacher, student, y, temperature,
                                      lambda_balancing, **kw)
        loss = jax.block_until_ready(loss)
        ref = _reference_loss(teacher.astype(jnp.float32),
                              student.astype(jnp.float32), y,
                              temperature, lambda_balancing)
        assert jnp.allclose(loss, ref, rtol=tol, atol=tol), (name, loss, ref)

    key = jax.random.PRNGKey(0)
    k1, k2, k3, k4 = jax.random.split(key, 4)

    # 1) Multi-tile batch grid (parallel per-tile partials): N=32, C=128, tile_n=8.
    check("multi_tile", *make_inputs(k1, 32, 128), tile_n=8)

    # 2) Ragged batch exercising the padded-row CE mask (N=13, tile=8).
    check("ragged_batch", *make_inputs(k2, 13, 64), tile_n=8)

    # 3) Class-chunked (large-C fallback) path with class padding: C=200, tile_c=128.
    check("class_chunked", *make_inputs(k3, 12, 200), tile_n=8, tile_c=128)

    # 4) bf16 logits end-to-end with auto (generation-aware) tiles.
    check("bf16", *make_inputs(k4, 24, 256, dtype=jnp.bfloat16), tol=1e-4)

    print("KERNEL_OK")
</pallas_src>

<mosaic_0001>
module attributes {stable_mosaic.version = 11 : i64} {
  func.func @_soft_distill_kernel(%arg0: i32, %arg1: memref<1xf32, #tpu.memory_space<smem>>, %arg2: memref<1xi32, #tpu.memory_space<smem>>, %arg3: memref<8x128xf32, #tpu.memory_space<vmem>>, %arg4: memref<8x128xf32, #tpu.memory_space<vmem>>, %arg5: memref<8x1xi32, #tpu.memory_space<vmem>>, %arg6: memref<1x8x128xf32, #tpu.memory_space<vmem>>, %arg7: memref<1x8x128xf32, #tpu.memory_space<vmem>>) attributes {dimension_semantics = [#tpu.dimension_semantics<parallel>], iteration_bounds = array<i64: 4>, scalar_prefetch = 0 : i64, scratch_operands = 0 : i64, tpu.core_type = #tpu.core_type<tc>, window_params = [{transform_indices = @transform_0, window_bounds = array<i64: 1>}, {transform_indices = @transform_1, window_bounds = array<i64: 1>}, {transform_indices = @transform_2, window_bounds = array<i64: 8, 128>}, {transform_indices = @transform_3, window_bounds = array<i64: 8, 128>}, {transform_indices = @transform_4, window_bounds = array<i64: 8, 1>}, {transform_indices = @transform_5, window_bounds = array<i64: 1, 8, 128>}, {transform_indices = @transform_6, window_bounds = array<i64: 1, 8, 128>}]} {
    %c0 = arith.constant 0 : index
    %0 = memref.load %arg1[%c0] : memref<1xf32, #tpu.memory_space<smem>>
    %c0_0 = arith.constant 0 : index
    %1 = memref.load %arg2[%c0_0] : memref<1xi32, #tpu.memory_space<smem>>
    %cst = arith.constant 1.000000e+00 : f32
    %2 = arith.divf %cst, %0 : f32
    %3 = math.log %0 : f32
    %c0_1 = arith.constant 0 : index
    %c0_2 = arith.constant 0 : index
    %4 = vector.load %arg4[%c0_1, %c0_2] : memref<8x128xf32, #tpu.memory_space<vmem>>, vector<8x128xf32>
    %c0_3 = arith.constant 0 : index
    %c0_4 = arith.constant 0 : index
    %5 = vector.load %arg3[%c0_3, %c0_4] : memref<8x128xf32, #tpu.memory_space<vmem>>, vector<8x128xf32>
    %c0_5 = arith.constant 0 : index
    %c0_6 = arith.constant 0 : index
    %6 = vector.load %arg5[%c0_5, %c0_6] : memref<8x1xi32, #tpu.memory_space<vmem>>, vector<8x1xi32>
    %cst_7 = arith.constant 0.000000e+00 : f32
    %7 = vector.broadcast %cst_7 : f32 to vector<8x128xf32>
    %8 = arith.cmpf oeq, %5, %7 : vector<8x128xf32>
    %9 = math.log %5 : vector<8x128xf32>
    %10 = vector.broadcast %3 : f32 to vector<8x128xf32>
    %11 = arith.subf %9, %10 : vector<8x128xf32>
    %12 = vector.broadcast %2 : f32 to vector<8x128xf32>
    %13 = arith.mulf %4, %12 : vector<8x128xf32>
    %14 = arith.subf %11, %13 : vector<8x128xf32>
    %15 = arith.mulf %5, %14 : vector<8x128xf32>
    %cst_8 = arith.constant 0.000000e+00 : f32
    %16 = vector.broadcast %cst_8 : f32 to vector<8x128xf32>
    %17 = arith.select %8, %16, %15 : vector<8x128xi1>, vector<8x128xf32>
    %cst_9 = arith.constant dense<0.000000e+00> : vector<8xf32>
    %18 = vector.multi_reduction <add>, %17, %cst_9 [1] : vector<8x128xf32> to vector<8xf32>
    %19 = vector.shape_cast %18 : vector<8xf32> to vector<8x1xf32>
    %cst_10 = arith.constant dense<0xFF800000> : vector<8xf32>
    %20 = vector.multi_reduction <maximumf>, %4, %cst_10 [1] : vector<8x128xf32> to vector<8xf32>
    %21 = vector.shape_cast %20 : vector<8xf32> to vector<8x1xf32>
    %22 = vector.broadcast %21 : vector<8x1xf32> to vector<8x128xf32>
    %23 = arith.subf %4, %22 : vector<8x128xf32>
    %24 = math.exp %23 : vector<8x128xf32>
    %cst_11 = arith.constant dense<0.000000e+00> : vector<8xf32>
    %25 = vector.multi_reduction <add>, %24, %cst_11 [1] : vector<8x128xf32> to vector<8xf32>
    %26 = vector.shape_cast %25 : vector<8xf32> to vector<8x1xf32>
    %27 = math.log %26 : vector<8x1xf32>
    %28 = arith.addf %21, %27 : vector<8x1xf32>
    %29 = tpu.iota {dimensions = array<i32: 1>} : vector<8x128xi32>
    %30 = vector.broadcast %6 : vector<8x1xi32> to vector<8x128xi32>
    %31 = arith.cmpi eq, %29, %30 : vector<8x128xi32>
    %cst_12 = arith.constant 0.000000e+00 : f32
    %32 = vector.broadcast %cst_12 : f32 to vector<8x128xf32>
    %33 = arith.select %31, %4, %32 : vector<8x128xi1>, vector<8x128xf32>
    %cst_13 = arith.constant dense<0.000000e+00> : vector<8xf32>
    %34 = vector.multi_reduction <add>, %33, %cst_13 [1] : vector<8x128xf32> to vector<8xf32>
    %35 = vector.shape_cast %34 : vector<8xf32> to vector<8x1xf32>
    %36 = arith.subf %28, %35 : vector<8x1xf32>
    %c3_i32 = arith.constant 3 : i32
    %37 = arith.cmpi slt, %arg0, %c3_i32 : i32
    %38 = arith.extui %37 : i1 to i32
    %c0_i32 = arith.constant 0 : i32
    %39 = arith.cmpi ne, %38, %c0_i32 : i32
    scf.if %39 {
      %43 = vector.shape_cast %36 : vector<8x1xf32> to vector<1x8x1xf32>
      %cst_16 = arith.constant dense<0.000000e+00> : vector<1xf32>
      %44 = vector.multi_reduction <add>, %43, %cst_16 [1, 2] : vector<1x8x1xf32> to vector<1xf32>
      %45 = vector.shape_cast %44 : vector<1xf32> to vector<1x1x1xf32>
      %46 = vector.extract %45[0, 0, 0] : f32 from vector<1x1x1xf32>
      %47 = vector.shape_cast %19 : vector<8x1xf32> to vector<1x8x1xf32>
      %cst_17 = arith.constant dense<0.000000e+00> : vector<1xf32>
      %48 = vector.multi_reduction <add>, %47, %cst_17 [1, 2] : vector<1x8x1xf32> to vector<1xf32>
      %49 = vector.shape_cast %48 : vector<1xf32> to vector<1x1x1xf32>
      %50 = vector.extract %49[0, 0, 0] : f32 from vector<1x1x1xf32>
      %51 = vector.broadcast %46 : f32 to vector<1x8x128xf32>
      %c0_18 = arith.constant 0 : index
      %c0_19 = arith.constant 0 : index
      %c0_20 = arith.constant 0 : index
      %52 = vector.load %arg6[%c0_18, %c0_19, %c0_20] : memref<1x8x128xf32, #tpu.memory_space<vmem>>, vector<1x8x128xf32>
      tpu.vector_store %arg6[%c0_18, %c0_19, %c0_20], %51 {strides = array<i32>} : memref<1x8x128xf32, #tpu.memory_space<vmem>>, vector<1x8x128xf32>,
      %53 = vector.broadcast %50 : f32 to vector<1x8x128xf32>
      %c0_21 = arith.constant 0 : index
      %c0_22 = arith.constant 0 : index
      %c0_23 = arith.constant 0 : index
      %54 = vector.load %arg7[%c0_21, %c0_22, %c0_23] : memref<1x8x128xf32, #tpu.memory_space<vmem>>, vector<1x8x128xf32>
      tpu.vector_store %arg7[%c0_21, %c0_22, %c0_23], %53 {strides = array<i32>} : memref<1x8x128xf32, #tpu.memory_space<vmem>>, vector<1x8x128xf32>,
    } else {
    }
    %c3_i32_14 = arith.constant 3 : i32
    %40 = arith.cmpi eq, %arg0, %c3_i32_14 : i32
    %41 = arith.extui %40 : i1 to i32
    %c0_i32_15 = arith.constant 0 : i32
    %42 = arith.cmpi ne, %41, %c0_i32_15 : i32
    scf.if %42 {
      %c8_i32 = arith.constant 8 : i32
      %43 = arith.muli %arg0, %c8_i32 : i32
      %44 = tpu.iota {dimensions = array<i32: 0>} : vector<8x1xi32>
      %45 = vector.broadcast %43 : i32 to vector<8x1xi32>
      %46 = arith.addi %45, %44 : vector<8x1xi32>
      %47 = vector.broadcast %1 : i32 to vector<8x1xi32>
      %48 = arith.cmpi slt, %46, %47 : vector<8x1xi32>
      %cst_16 = arith.constant 0.000000e+00 : f32
      %49 = vector.broadcast %cst_16 : f32 to vector<8x1xf32>
      %50 = arith.select %48, %36, %49 : vector<8x1xi1>, vector<8x1xf32>
      %51 = vector.shape_cast %50 : vector<8x1xf32> to vector<1x8x1xf32>
      %cst_17 = arith.constant dense<0.000000e+00> : vector<1xf32>
      %52 = vector.multi_reduction <add>, %51, %cst_17 [1, 2] : vector<1x8x1xf32> to vector<1xf32>
      %53 = vector.shape_cast %52 : vector<1xf32> to vector<1x1x1xf32>
      %54 = vector.extract %53[0, 0, 0] : f32 from vector<1x1x1xf32>
      %55 = vector.shape_cast %19 : vector<8x1xf32> to vector<1x8x1xf32>
      %cst_18 = arith.constant dense<0.000000e+00> : vector<1xf32>
      %56 = vector.multi_reduction <add>, %55, %cst_18 [1, 2] : vector<1x8x1xf32> to vector<1xf32>
      %57 = vector.shape_cast %56 : vector<1xf32> to vector<1x1x1xf32>
      %58 = vector.extract %57[0, 0, 0] : f32 from vector<1x1x1xf32>
      %59 = vector.broadcast %54 : f32 to vector<1x8x128xf32>
      %c0_19 = arith.constant 0 : index
      %c0_20 = arith.constant 0 : index
      %c0_21 = arith.constant 0 : index
      %60 = vector.load %arg6[%c0_19, %c0_20, %c0_21] : memref<1x8x128xf32, #tpu.memory_space<vmem>>, vector<1x8x128xf32>
      tpu.vector_store %arg6[%c0_19, %c0_20, %c0_21], %59 {strides = array<i32>} : memref<1x8x128xf32, #tpu.memory_space<vmem>>, vector<1x8x128xf32>,
      %61 = vector.broadcast %58 : f32 to vector<1x8x128xf32>
      %c0_22 = arith.constant 0 : index
      %c0_23 = arith.constant 0 : index
      %c0_24 = arith.constant 0 : index
      %62 = vector.load %arg7[%c0_22, %c0_23, %c0_24] : memref<1x8x128xf32, #tpu.memory_space<vmem>>, vector<1x8x128xf32>
      tpu.vector_store %arg7[%c0_22, %c0_23, %c0_24], %61 {strides = array<i32>} : memref<1x8x128xf32, #tpu.memory_space<vmem>>, vector<1x8x128xf32>,
    } else {
    }
    return
  }
  func.func @transform_0(%arg0: i32) -> i32 {
    %c0_i32 = arith.constant 0 : i32
    %c0_i32_0 = arith.constant 0 : i32
    return %c0_i32 : i32
  }
  func.func @transform_1(%arg0: i32) -> i32 {
    %c0_i32 = arith.constant 0 : i32
    %c0_i32_0 = arith.constant 0 : i32
    return %c0_i32 : i32
  }
  func.func @transform_2(%arg0: i32) -> (i32, i32) {
    %c0_i32 = arith.constant 0 : i32
    %c0_i32_0 = arith.constant 0 : i32
    return %arg0, %c0_i32 : i32, i32
  }
  func.func @transform_3(%arg0: i32) -> (i32, i32) {
    %c0_i32 = arith.constant 0 : i32
    %c0_i32_0 = arith.constant 0 : i32
    return %arg0, %c0_i32 : i32, i32
  }
  func.func @transform_4(%arg0: i32) -> (i32, i32) {
    %c0_i32 = arith.constant 0 : i32
    %c0_i32_0 = arith.constant 0 : i32
    return %arg0, %c0_i32 : i32, i32
  }
  func.func @transform_5(%arg0: i32) -> (i32, i32, i32) {
    %c0_i32 = arith.constant 0 : i32
    %c0_i32_0 = arith.constant 0 : i32
    %c0_i32_1 = arith.constant 0 : i32
    return %arg0, %c0_i32, %c0_i32_0 : i32, i32, i32
  }
  func.func @transform_6(%arg0: i32) -> (i32, i32, i32) {
    %c0_i32 = arith.constant 0 : i32
    %c0_i32_0 = arith.constant 0 : i32
    %c0_i32_1 = arith.constant 0 : i32
    return %arg0, %c0_i32, %c0_i32_0 : i32, i32, i32
  }
}

</mosaic_0001>

<llo_original>
// kernel: tpu_custom_call.1
$region0: #{tpu_custom_call.1}
  #allocation0 [shape = 'u32[]', space=smem, size = 0x4, offset = 0x4, fixed_abs, tag = 'smem constant byte address 0x4 - core index']
  #allocation1 [shape = 'u32[144,128]{1,0:T(1,128)}', space=vmem, size = 0x12000, scoped, tag = 'internal scratch']
  #allocation2 [shape = 'f32[1]{0:T(128)S(6)}', space=smem, size = 0x200, scoped, tag = 'scoped memory for tpu_custom_call.1']
  #allocation3 [shape = 's32[1]{0:T(128)S(6)}', space=smem, size = 0x200, scoped, tag = 'scoped memory for tpu_custom_call.1']
  %s0 = inlined_call_operand.<no memory space> [shape: f32[1], index: 0, kind: input, shape index: {}]
  %s1 = inlined_call_operand.<no memory space> [shape: s32[1], index: 1, kind: input, shape index: {}]
  %s2 = inlined_call_operand.vmem [shape: f32[32,128], index: 2, kind: input, shape index: {}]
  %s3 = inlined_call_operand.hbm [shape: f32[32,128], index: 3, kind: input, shape index: {}]
  %s4 = inlined_call_operand.vmem [shape: s32[32,1], index: 4, kind: input, shape index: {}]
  %s5 = inlined_call_operand.hbm [shape: f32[4,8,128], index: 5, kind: output, shape index: {0}]
  %s6 = inlined_call_operand.hbm [shape: f32[4,8,128], index: 6, kind: output, shape index: {1}]
  %7 = xla_tuple %s5, %s6
  %s8 = sld [smem:[#allocation0]]
  $region73: #{tpu_custom_call.1} parent=0
    _
  %s10 = ssub.s32 1, %s8
  %s11 = scalar_select 0, %s10, %s8
  %12 = sst [smem:[#allocation2]] %s0
  %13 = sst [smem:[#allocation3]] %s1
  $region1: #{tpu_custom_call.1} parent=0
    #allocation4 [shape = 'u8[8192]{0}', space=vmem, size = 0x2000, scoped, tag = 'input window, operand 3']
    #allocation5 [shape = 's32[2]{0}', space=sflag, size = 0x8, scoped, tag = 'scoped memory for tpu_custom_call.1']
    #allocation6 [shape = 's32[2]{0}', space=sflag, size = 0x8, scoped, tag = 'scoped memory for tpu_custom_call.1']
    #allocation7 [shape = 'u8[8192]{0}', space=vmem, size = 0x2000, scoped, tag = 'output window, operand 0']
    #allocation8 [shape = 'u8[8192]{0}', space=vmem, size = 0x2000, scoped, tag = 'output window, operand 1']
    #allocation9 [shape = 's32[2]{0}', space=sflag, size = 0x8, scoped, tag = 'scoped memory for tpu_custom_call.1']
    %14 = vsyncpa [#allocation5], 0
    %s15 = scalar_lea.sflag [#allocation5], 1
    %16 = vsyncpa %s15, 0
    %17 = vsyncpa [#allocation6], 0
    %s18 = scalar_lea.sflag [#allocation6], 1
    %19 = vsyncpa %s18, 0
    %20 = vsyncpa [#allocation9], 0
    %s21 = scalar_lea.sflag [#allocation9], 1
    %22 = vsyncpa %s21, 0
    loop: start=0, step=1, limit=6
    $region2: #{tpu_custom_call.1} parent=1 // loop_pre_header
      _
    $region3: #{tpu_custom_call.1} parent=1 // loop_header
      %s24 = sphi 0, %s28
      %p25 = scmp.ge.s32.totalorder %s24, 6
      %s32 = sphi 0, %s32
      %s34 = sphi 0, %s32
      %s35 = sphi 0, %s34
      %s49 = sphi 0, %s35
      %s53 = sphi 0, %s53
      %s55 = sphi 0, %s53
      %s56 = sphi 0, %s55
      %s70 = sphi 0, %s56
      %s76 = sphi 0, %s78
      %s79 = sphi 0, %s76
      %s80 = sphi 0, %s79
      %s96 = sphi 0, %s80
      %s102 = sphi 0, %s104
      %s105 = sphi 0, %s102
      %s106 = sphi 0, %s105
      %s122 = sphi 0, %s106
      %s128 = sphi 0, %s130
      %s131 = sphi 0, %s128
      %s132 = sphi 0, %s131
      %s148 = sphi 0, %s132
      %s154 = sphi 0, %s156
      %s157 = sphi 0, %s154
      %s158 = sphi 0, %s157
      %s174 = sphi 0, %s158
      %s180 = sphi 0, %s182
      %s183 = sphi 0, %s180
      %s184 = sphi 0, %s183
      %s200 = sphi 0, %s184
    $region4: #{tpu_custom_call.1} parent=1 // loop_header_branch
      %27 = sbr.rel (%p25) target = $region8
    $region5: #{tpu_custom_call.1} parent=1 // loop_body
      %s29 = ssub.s32 %s24, 1
      %s30 = ssub.s32 %s24, 2
      %s31 = sadd.s32 %s24, 1
      %s33 = sadd.s32 %s32, 1
      %p36 = scmp.eq.s32.totalorder %s24, 3
      %p37 = scmp.ne.s32.totalorder %s32, %s34
      %p38 = scmp.eq.s32.totalorder %s24, 0
      %p39 = por %p37, %p38
      %p40 = scmp.ne.s32.totalorder %s32, %s34
      %p41 = scmp.eq.s32.totalorder %s29, 3
      %p42 = por %p40, %p41
      %p43 = scmp.ne.s32.totalorder %s34, %s35
      %p44 = scmp.eq.s32.totalorder %s29, 0
      %p45 = por %p43, %p44
      %p46 = scmp.ne.s32.totalorder %s34, %s35
      %p47 = scmp.eq.s32.totalorder %s30, 3
      %p48 = por %p46, %p47
      %p50 = scmp.ne.s32.totalorder %s35, %s49
      %p51 = scmp.eq.s32.totalorder %s30, 0
      %p52 = por %p50, %p51
      %s54 = sadd.s32 %s53, 1
      %p57 = scmp.eq.s32.totalorder %s24, 3
      %p58 = scmp.ne.s32.totalorder %s53, %s55
      %p59 = scmp.eq.s32.totalorder %s24, 0
      %p60 = por %p58, %p59
      %p61 = scmp.ne.s32.totalorder %s53, %s55
      %p62 = scmp.eq.s32.totalorder %s29, 3
      %p63 = por %p61, %p62
      %p64 = scmp.ne.s32.totalorder %s55, %s56
      %p65 = scmp.eq.s32.totalorder %s29, 0
      %p66 = por %p64, %p65
      %p67 = scmp.ne.s32.totalorder %s55, %s56
      %p68 = scmp.eq.s32.totalorder %s30, 3
      %p69 = por %p67, %p68
      %p71 = scmp.ne.s32.totalorder %s56, %s70
      %p72 = scmp.eq.s32.totalorder %s30, 0
      %p73 = por %p71, %p72
      %s74 = ssub.s32 %s24, %s31
      %p75 = scmp.eq.s32.totalorder %s74, 0
      %s77 = sadd.s32 %s76, 1
      %s78 = scalar_select %p75, %s76, %s77
      %p81 = pneg %p75
      %p82 = scmp.eq.s32.totalorder %s24, 3
      %p83 = por %p81, %p82
      %p84 = scmp.ne.s32.totalorder %s76, %s79
      %p85 = scmp.eq.s32.totalorder %s24, 0
      %p86 = por %p84, %p85
      %p87 = scmp.ne.s32.totalorder %s76, %s79
      %p88 = scmp.eq.s32.totalorder %s29, 3
      %p89 = por %p87, %p88
      %p90 = scmp.ne.s32.totalorder %s79, %s80
      %p91 = scmp.eq.s32.totalorder %s29, 0
      %p92 = por %p90, %p91
      %p93 = scmp.ne.s32.totalorder %s79, %s80
      %p94 = scmp.eq.s32.totalorder %s30, 3
      %p95 = por %p93, %p94
      %p97 = scmp.ne.s32.totalorder %s80, %s96
      %p98 = scmp.eq.s32.totalorder %s30, 0
      %p99 = por %p97, %p98
      %s100 = ssub.s32 %s24, %s31
      %p101 = scmp.eq.s32.totalorder %s100, 0
      %s103 = sadd.s32 %s102, 1
      %s104 = scalar_select %p101, %s102, %s103
      %p107 = pneg %p101
      %p108 = scmp.eq.s32.totalorder %s24, 3
      %p109 = por %p107, %p108
      %p110 = scmp.ne.s32.totalorder %s102, %s105
      %p111 = scmp.eq.s32.totalorder %s24, 0
      %p112 = por %p110, %p111
      %p113 = scmp.ne.s32.totalorder %s102, %s105
      %p114 = scmp.eq.s32.totalorder %s29, 3
      %p115 = por %p113, %p114
      %p116 = scmp.ne.s32.totalorder %s105, %s106
      %p117 = scmp.eq.s32.totalorder %s29, 0
      %p118 = por %p116, %p117
      %p119 = scmp.ne.s32.totalorder %s105, %s106
      %p120 = scmp.eq.s32.totalorder %s30, 3
      %p121 = por %p119, %p120
      %p123 = scmp.ne.s32.totalorder %s106, %s122
      %p124 = scmp.eq.s32.totalorder %s30, 0
      %p125 = por %p123, %p124
      %s126 = ssub.s32 %s24, %s31
      %p127 = scmp.eq.s32.totalorder %s126, 0
      %s129 = sadd.s32 %s128, 1
      %s130 = scalar_select %p127, %s128, %s129
      %p133 = pneg %p127
      %p134 = scmp.eq.s32.totalorder %s24, 3
      %p135 = por %p133, %p134
      %p136 = scmp.ne.s32.totalorder %s128, %s131
      %p137 = scmp.eq.s32.totalorder %s24, 0
      %p138 = por %p136, %p137
      %p139 = scmp.ne.s32.totalorder %s128, %s131
      %p140 = scmp.eq.s32.totalorder %s29, 3
      %p141 = por %p139, %p140
      %p142 = scmp.ne.s32.totalorder %s131, %s132
      %p143 = scmp.eq.s32.totalorder %s29, 0
      %p144 = por %p142, %p143
      %p145 = scmp.ne.s32.totalorder %s131, %s132
      %p146 = scmp.eq.s32.totalorder %s30, 3
      %p147 = por %p145, %p146
      %p149 = scmp.ne.s32.totalorder %s132, %s148
      %p150 = scmp.eq.s32.totalorder %s30, 0
      %p151 = por %p149, %p150
      %s152 = ssub.s32 %s24, %s31
      %p153 = scmp.eq.s32.totalorder %s152, 0
      %s155 = sadd.s32 %s154, 1
      %s156 = scalar_select %p153, %s154, %s155
      %p159 = pneg %p153
      %p160 = scmp.eq.s32.totalorder %s24, 3
      %p161 = por %p159, %p160
      %p162 = scmp.ne.s32.totalorder %s154, %s157
      %p163 = scmp.eq.s32.totalorder %s24, 0
      %p164 = por %p162, %p163
      %p165 = scmp.ne.s32.totalorder %s154, %s157
      %p166 = scmp.eq.s32.totalorder %s29, 3
      %p167 = por %p165, %p166
      %p168 = scmp.ne.s32.totalorder %s157, %s158
      %p169 = scmp.eq.s32.totalorder %s29, 0
      %p170 = por %p168, %p169
      %p171 = scmp.ne.s32.totalorder %s157, %s158
      %p172 = scmp.eq.s32.totalorder %s30, 3
      %p173 = por %p171, %p172
      %p175 = scmp.ne.s32.totalorder %s158, %s174
      %p176 = scmp.eq.s32.totalorder %s30, 0
      %p177 = por %p175, %p176
      %s178 = ssub.s32 %s24, %s31
      %p179 = scmp.eq.s32.totalorder %s178, 0
      %s181 = sadd.s32 %s180, 1
      %s182 = scalar_select %p179, %s180, %s181
      %p185 = pneg %p179
      %p186 = scmp.eq.s32.totalorder %s24, 3
      %p187 = por %p185, %p186
      %p188 = scmp.ne.s32.totalorder %s180, %s183
      %p189 = scmp.eq.s32.totalorder %s24, 0
      %p190 = por %p188, %p189
      %p191 = scmp.ne.s32.totalorder %s180, %s183
      %p192 = scmp.eq.s32.totalorder %s29, 3
      %p193 = por %p191, %p192
      %p194 = scmp.ne.s32.totalorder %s183, %s184
      %p195 = scmp.eq.s32.totalorder %s29, 0
      %p196 = por %p194, %p195
      %p197 = scmp.ne.s32.totalorder %s183, %s184
      %p198 = scmp.eq.s32.totalorder %s30, 3
      %p199 = por %p197, %p198
      %p201 = scmp.ne.s32.totalorder %s184, %s200
      %p202 = scmp.eq.s32.totalorder %s30, 0
      %p203 = por %p201, %p202
      %p204 = scmp.le.s32.totalorder 1, %s24
      %p205 = scmp.lt.s32.totalorder %s24, 5
      %p206 = pnand %p204, %p205
      %p207 = pneg %p206
      // Predicated region
      $region9: #{tpu_custom_call.1} parent=5 // pred_check
        _
      $region10: #{tpu_custom_call.1} parent=5 // pred_check_branch
        %209 = sbr.rel (%p206) target = $region12
      $region11: #{tpu_custom_call.1} parent=5 // pred_region
        %s210 = ssub.s32 %s24, 1
        // Predicated region
        $region13: #{tpu_custom_call.1} parent=11 // pred_check
          %p211 = pneg %p45
        $region14: #{tpu_custom_call.1} parent=11 // pred_check_branch
          %213 = sbr.rel (%p211) target = $region16
        $region15: #{tpu_custom_call.1} parent=11 // pred_region
          _
        $region16: #{tpu_custom_call.1} parent=11 // pred_fallthru
          _
        // Predicated region
        $region17: #{tpu_custom_call.1} parent=11 // pred_check
          %p214 = pneg %p66
        $region18: #{tpu_custom_call.1} parent=11 // pred_check_branch
          %216 = sbr.rel (%p214) target = $region20
        $region19: #{tpu_custom_call.1} parent=11 // pred_region
          _
        $region20: #{tpu_custom_call.1} parent=11 // pred_fallthru
          _
      $region12: #{tpu_custom_call.1} parent=5 // pred_fallthru
        _
      %p217 = scmp.lt.s32.totalorder %s24, 4
      // Predicated region
      $region21: #{tpu_custom_call.1} parent=5 // pred_check
        %p218 = pneg %p217
      $region22: #{tpu_custom_call.1} parent=5 // pred_check_branch
        %220 = sbr.rel (%p218) target = $region24
      $region23: #{tpu_custom_call.1} parent=5 // pred_region
        // Predicated region
        $region25: #{tpu_custom_call.1} parent=23 // pred_check
          %p221 = pneg %p86
        $region26: #{tpu_custom_call.1} parent=23 // pred_check_branch
          %223 = sbr.rel (%p221) target = $region28
        $region27: #{tpu_custom_call.1} parent=23 // pred_region
          %p224 = scmp.lt.s32.totalorder %s24, 3
          %s225 = scalar_select %p224, %s24, 3
          %s226 = smul.addr %s225, 8
          %s227 = scalar_lea.vmem %s2, %s226
        $region28: #{tpu_custom_call.1} parent=23 // pred_fallthru
          _
        // Predicated region
        $region29: #{tpu_custom_call.1} parent=23 // pred_check
          %p228 = pneg %p112
        $region30: #{tpu_custom_call.1} parent=23 // pred_check_branch
          %230 = sbr.rel (%p228) target = $region32
        $region31: #{tpu_custom_call.1} parent=23 // pred_region
          %s231 = sand.u32 %s102, 1
          %s232 = scalar_lea.sflag [#allocation5], %s231
          %s233 = sand.u32 %s102, 1
          %s234 = smul.addr %s233, 8
          %s235 = scalar_lea.vmem [#allocation4], %s234
          %s237 = ssub.s32 128, 128
          %238 = vsyncadd %s232, %s237
          %s239 = smul.addr %s24, 128
          %s240 = scalar_lea.hbm %s3, %s239
          %s242 = sshll.u32 %s235, 4
          %s243 = int_to_ptr.vmem [resolvable:$true] %s242
          %245 = dma.hbm_to_vmem [thread:$0]  %s240, 128, %s243, %s232
        $region32: #{tpu_custom_call.1} parent=23 // pred_fallthru
          _
        // Predicated region
        $region33: #{tpu_custom_call.1} parent=23 // pred_check
          %p246 = pneg %p138
        $region34: #{tpu_custom_call.1} parent=23 // pred_check_branch
          %248 = sbr.rel (%p246) target = $region36
        $region35: #{tpu_custom_call.1} parent=23 // pred_region
          %p249 = scmp.lt.s32.totalorder %s24, 3
          %s250 = scalar_select %p249, %s24, 3
          %s251 = smul.addr %s250, 8
          %s252 = scalar_lea.vmem %s4, %s251
        $region36: #{tpu_custom_call.1} parent=23 // pred_fallthru
          _
      $region24: #{tpu_custom_call.1} parent=5 // pred_fallthru
        _
      %p253 = scmp.le.s32.totalorder 1, %s24
      %p254 = scmp.lt.s32.totalorder %s24, 5
      %p255 = pnand %p253, %p254
      %p256 = pneg %p255
      // Predicated region
      $region37: #{tpu_custom_call.1} parent=5 // pred_check
        _
      $region38: #{tpu_custom_call.1} parent=5 // pred_check_branch
        %258 = sbr.rel (%p255) target = $region40
      $region39: #{tpu_custom_call.1} parent=5 // pred_region
        %s259 = ssub.s32 %s24, 1
        %s260 = sand.u32 %s105, 1
        %s261 = scalar_lea.sflag [#allocation5], %s260
        %s262 = sand.u32 %s105, 1
        %s263 = smul.addr %s262, 8
        %s264 = scalar_lea.vmem [#allocation4], %s263
        // Predicated region
        $region41: #{tpu_custom_call.1} parent=39 // pred_check
          %p265 = pneg %p118
        $region42: #{tpu_custom_call.1} parent=39 // pred_check_branch
          %267 = sbr.rel (%p265) target = $region44
        $region43: #{tpu_custom_call.1} parent=39 // pred_region
          %268 = dma.done %s261, 128
        $region44: #{tpu_custom_call.1} parent=39 // pred_fallthru
          _
        %p269 = pneg %p45
        %p270 = pneg %p42
        %p271 = pneg %p66
        %p272 = pneg %p63
        %p273 = scmp.lt.s32.totalorder %s29, 3
        %s274 = scalar_select %p273, %s29, 3
        %s275 = smul.addr %s274, 8
        %s276 = scalar_lea.vmem %s2, %s275
        %p277 = pneg %p92
        %p278 = pneg %p89
        %s279 = sand.u32 %s105, 1
        %s280 = scalar_lea.sflag [#allocation5], %s279
        %s281 = sand.u32 %s105, 1
        %s282 = smul.addr %s281, 8
        %s283 = scalar_lea.vmem [#allocation4], %s282
        %p284 = pneg %p118
        %p285 = pneg %p115
        %p286 = scmp.lt.s32.totalorder %s29, 3
        %s287 = scalar_select %p286, %s29, 3
        %s288 = smul.addr %s287, 8
        %s289 = scalar_lea.vmem %s4, %s288
        %p290 = pneg %p144
        %p291 = pneg %p141
        %p292 = pneg %p170
        %p293 = pneg %p167
        %s294 = sand.u32 %s157, 1
        %s295 = scalar_lea.sflag [#allocation6], %s294
        %s296 = sand.u32 %s157, 1
        %s297 = smul.addr %s296, 8
        %s298 = scalar_lea.vmem [#allocation7], %s297
        %p299 = pneg %p196
        %p300 = pneg %p193
        %s301 = sand.u32 %s183, 1
        %s302 = scalar_lea.sflag [#allocation9], %s301
        %s303 = sand.u32 %s183, 1
        %s304 = smul.addr %s303, 8
        %s305 = scalar_lea.vmem [#allocation8], %s304
        %p306 = scmp.lt.s32.totalorder %s29, 3
        %s307 = scalar_select %p306, %s29, 3
        %s308 = smul.addr %s307, 8
        %s309 = scalar_lea.vmem %s2, %s308
        %p310 = scmp.lt.s32.totalorder %s29, 3
        %s311 = scalar_select %p310, %s29, 3
        %s312 = smul.addr %s311, 8
        %s313 = scalar_lea.vmem %s4, %s312
        %s314 = sld [smem:[#allocation2]]
        %s315 = sld [smem:[#allocation3]]
        %v316 = vstv %s314
        %v317 = vrcp.pop %v316
        %s318 = vtos %v317
        %v319 = vstv %s314
        %v320 = vlog2.pop %v319
        %v321 = vmul.f32 %v320, 0.6931472
        %s322 = vtos %v321
        %v323 = vld [vmem:[%s264] sm:$0xff]
        %v324 = vld [vmem:[%s309] sm:$0xff]
        %v325 = vld [vmem:[%s313] sm:$0xff]
        %vm326 = vcmp.eq.f32.partialorder %v324, 0.0
        %v327 = vlog2.pop %v324
        %v328 = vmul.f32 %v327, 0.6931472
        %v329 = vstv %s322
        %v330 = vsub.f32 %v328, %v329
        %v331 = vstv %s318
        %v332 = vmul.f32 %v323, %v331
        %v333 = vsub.f32 %v330, %v332
        %v334 = vmul.f32 %v324, %v333
        %v335 = vsel %vm326, 0.0, %v334
        %336 = vadd.xlane.f32.xlu0 %v335
        %v337 = vpop.xlane.xlu0 %336
        %338 = vmax.xlane.f32.xlu0 %v323
        %v339 = vpop.xlane.xlu0 %338
        %v340 = vsub.f32 %v323, %v339
        %v341 = vmul.f32 %v340, 1.442695
        %v342 = vpow.pop %v341
        %343 = vadd.xlane.f32.xlu0 %v342
        %v344 = vpop.xlane.xlu0 %343
        %v345 = vlog2.pop %v344
        %v346 = vmul.f32 %v345, 0.6931472
        %v347 = vadd.f32 %v339, %v346
        %v348 = vlaneseq
        %v349 = vand.u32 %v348, 127
        %350 = vset.pattern.permute.xlu0 0
        %351 = vperm.xlu0 %350, %v325
        %v352 = vpop.permute.xlu0 %351
        %vm353 = vcmp.eq.s32.totalorder %v349, %v352
        %v354 = vsel %vm353, %v323, 0.0
        %355 = vadd.xlane.f32.xlu0 %v354
        %v356 = vpop.xlane.xlu0 %355
        %v357 = vsub.f32 %v347, %v356
        %p358 = scmp.lt.s32.totalorder %s29, 3
        // Predicated region
        $region45: #{tpu_custom_call.1} parent=39 // pred_check
          %p359 = pneg %p358
        $region46: #{tpu_custom_call.1} parent=39 // pred_check_branch
          %361 = sbr.rel (%p359) target = $region48
        $region47: #{tpu_custom_call.1} parent=39 // pred_region
          %vm362 = vcmask 7168
          %v363 = vsel %vm362, %v357, 0.0
          %364 = vadd.xlane.f32.xlu0 %v363
          %v365 = vpop.xlane.xlu0 %364
          %v366 = vrot.slane %v365, 4
          %v367 = vadd.f32 %v365, %v366
          %v368 = vrot.slane %v367, 2
          %v369 = vadd.f32 %v367, %v368
          %v370 = vrot.slane %v369, 1
          %v371 = vadd.f32 %v369, %v370
          %s372 = vtos %v371
          %v373 = vsel %vm362, %v337, 0.0
          %374 = vadd.xlane.f32.xlu0 %v373
          %v375 = vpop.xlane.xlu0 %374
          %v376 = vrot.slane %v375, 4
          %v377 = vadd.f32 %v375, %v376
          %v378 = vrot.slane %v377, 2
          %v379 = vadd.f32 %v377, %v378
          %v380 = vrot.slane %v379, 1
          %v381 = vadd.f32 %v379, %v380
          %s382 = vtos %v381
          %v383 = vstv %s372
          %384 = vst [vmem:[%s298] sm:$0xff] %v383
          %v385 = vstv %s382
          %386 = vst [vmem:[%s305] sm:$0xff] %v385
        $region48: #{tpu_custom_call.1} parent=39 // pred_fallthru
          _
        %p387 = scmp.eq.s32.totalorder %s29, 3
        // Predicated region
        $region49: #{tpu_custom_call.1} parent=39 // pred_check
          %p388 = pneg %p387
        $region50: #{tpu_custom_call.1} parent=39 // pred_check_branch
          %390 = sbr.rel (%p388) target = $region52
        $region51: #{tpu_custom_call.1} parent=39 // pred_region
          %s391 = smul.u32 %s29, 8
          %v392 = vlaneseq
          %v393 = vshrl.u32 %v392, 7
          %v394 = vstv %s391
          %v395 = vadd.s32 %v394, %v393
          %v396 = vstv %s315
          %vm397 = vcmp.lt.s32.totalorder %v395, %v396
          %v398 = vsel %vm397, %v357, 0.0
          %vm399 = vcmask 7168
          %v400 = vsel %vm399, %v398, 0.0
          %401 = vadd.xlane.f32.xlu0 %v400
          %v402 = vpop.xlane.xlu0 %401
          %v403 = vrot.slane %v402, 4
          %v404 = vadd.f32 %v402, %v403
          %v405 = vrot.slane %v404, 2
          %v406 = vadd.f32 %v404, %v405
          %v407 = vrot.slane %v406, 1
          %v408 = vadd.f32 %v406, %v407
          %s409 = vtos %v408
          %v410 = vsel %vm399, %v337, 0.0
          %411 = vadd.xlane.f32.xlu0 %v410
          %v412 = vpop.xlane.xlu0 %411
          %v413 = vrot.slane %v412, 4
          %v414 = vadd.f32 %v412, %v413
          %v415 = vrot.slane %v414, 2
          %v416 = vadd.f32 %v414, %v415
          %v417 = vrot.slane %v416, 1
          %v418 = vadd.f32 %v416, %v417
          %s419 = vtos %v418
          %v420 = vstv %s409
          %421 = vst [vmem:[%s298] sm:$0xff] %v420
          %v422 = vstv %s419
          %423 = vst [vmem:[%s305] sm:$0xff] %v422
        $region52: #{tpu_custom_call.1} parent=39 // pred_fallthru
          _
        %s424 = sand.u32 %s157, 1
        %s425 = scalar_lea.sflag [#allocation6], %s424
        %s426 = sand.u32 %s157, 1
        %s427 = smul.addr %s426, 8
        %s428 = scalar_lea.vmem [#allocation7], %s427
        %s429 = sand.u32 %s183, 1
        %s430 = scalar_lea.sflag [#allocation9], %s429
        %s431 = sand.u32 %s183, 1
        %s432 = smul.addr %s431, 8
        %s433 = scalar_lea.vmem [#allocation8], %s432
        // Predicated region
        $region53: #{tpu_custom_call.1} parent=39 // pred_check
          %p434 = pneg %p167
        $region54: #{tpu_custom_call.1} parent=39 // pred_check_branch
          %436 = sbr.rel (%p434) target = $region56
        $region55: #{tpu_custom_call.1} parent=39 // pred_region
          %s438 = ssub.s32 128, 128
          %439 = vsyncadd %s425, %s438
          %s440 = smul.addr %s29, 128
          %s441 = scalar_lea.hbm %s5, %s440
          %s443 = sshll.u32 %s428, 4
          %s444 = int_to_ptr.vmem [resolvable:$true] %s443
          %446 = dma.vmem_to_hbm [thread:$0]  %s444, 128, %s441, %s425
        $region56: #{tpu_custom_call.1} parent=39 // pred_fallthru
          _
        // Predicated region
        $region57: #{tpu_custom_call.1} parent=39 // pred_check
          %p447 = pneg %p193
        $region58: #{tpu_custom_call.1} parent=39 // pred_check_branch
          %449 = sbr.rel (%p447) target = $region60
        $region59: #{tpu_custom_call.1} parent=39 // pred_region
          %s451 = ssub.s32 128, 128
          %452 = vsyncadd %s430, %s451
          %s453 = smul.addr %s29, 128
          %s454 = scalar_lea.hbm %s6, %s453
          %s456 = sshll.u32 %s433, 4
          %s457 = int_to_ptr.vmem [resolvable:$true] %s456
          %459 = dma.vmem_to_hbm [thread:$0]  %s457, 128, %s454, %s430
        $region60: #{tpu_custom_call.1} parent=39 // pred_fallthru
          _
      $region40: #{tpu_custom_call.1} parent=5 // pred_fallthru
        _
      %p460 = scmp.le.s32.totalorder 2, %s24
      // Predicated region
      $region61: #{tpu_custom_call.1} parent=5 // pred_check
        %p461 = pneg %p460
      $region62: #{tpu_custom_call.1} parent=5 // pred_check_branch
        %463 = sbr.rel (%p461) target = $region64
      $region63: #{tpu_custom_call.1} parent=5 // pred_region
        %s464 = ssub.s32 %s24, 2
        // Predicated region
        $region65: #{tpu_custom_call.1} parent=63 // pred_check
          %p465 = pneg %p173
        $region66: #{tpu_custom_call.1} parent=63 // pred_check_branch
          %467 = sbr.rel (%p465) target = $region68
        $region67: #{tpu_custom_call.1} parent=63 // pred_region
          %s468 = sand.u32 %s158, 1
          %s469 = scalar_lea.sflag [#allocation6], %s468
          %s470 = sand.u32 %s158, 1
          %s471 = smul.addr %s470, 8
          %s472 = scalar_lea.vmem [#allocation7], %s471
          %473 = dma.done %s469, 128
        $region68: #{tpu_custom_call.1} parent=63 // pred_fallthru
          _
        // Predicated region
        $region69: #{tpu_custom_call.1} parent=63 // pred_check
          %p474 = pneg %p199
        $region70: #{tpu_custom_call.1} parent=63 // pred_check_branch
          %476 = sbr.rel (%p474) target = $region72
        $region71: #{tpu_custom_call.1} parent=63 // pred_region
          %s477 = sand.u32 %s184, 1
          %s478 = scalar_lea.sflag [#allocation9], %s477
          %s479 = sand.u32 %s184, 1
          %s480 = smul.addr %s479, 8
          %s481 = scalar_lea.vmem [#allocation8], %s480
          %482 = dma.done %s478, 128
        $region72: #{tpu_custom_call.1} parent=63 // pred_fallthru
          _
      $region64: #{tpu_custom_call.1} parent=5 // pred_fallthru
        _
    $region6: #{tpu_custom_call.1} parent=1 // loop_footer
      %s28 = sadd.s32 1, %s24
    $region7: #{tpu_custom_call.1} parent=1 // loop_footer_branch
      %23 = sbr.rel target = $region3
    $region8: #{tpu_custom_call.1} parent=1 // loop_exit
      _
    %483 = vsyncpa [#allocation5], 1
    %s484 = scalar_lea.sflag [#allocation5], 1
    %485 = vsyncpa %s484, 1
    %486 = vsyncpa [#allocation6], 1
    %s487 = scalar_lea.sflag [#allocation6], 1
    %488 = vsyncpa %s487, 1
    %489 = vsyncpa [#allocation9], 1
    %s490 = scalar_lea.sflag [#allocation9], 1
    %491 = vsyncpa %s490, 1

</llo_original>
